<compile_context>
chip_gen: v7x
topology: tpu7x:2x2x1
jax: 0.10.0
libtpu: 0.0.40
codegen_flags: <defaults>
</compile_context>

<pallas_src>
import functools

import jax
import jax.numpy as jnp
from jax.experimental import pallas as pl
from jax.experimental.pallas import tpu as pltpu


def _round_up(x, m):
    return ((x + m - 1) // m) * m


def _tpu_generation_info():
    """Best-effort hardware query for generation-aware tuning.

    Returns (vmem_capacity_bytes, num_tensorcores, vpu_lacks_bf16).  Falls back
    to conservative defaults (128 MiB, 1 core, f32 VPU path) if unavailable.
    """
    vmem_bytes = 128 * 1024 * 1024
    num_cores = 1
    old_vpu = False
    try:
        info = pltpu.get_tpu_info()
        vmem_bytes = int(getattr(info, "vmem_capacity_bytes", vmem_bytes))
        num_cores = int(getattr(info, "num_cores",
                                getattr(info, "core_count", num_cores)))
    except Exception:  # advisory only — never let the query break the kernel
        pass
    try:
        kind = jax.devices()[0].device_kind.lower()
        # v5e and older: VPU/EUP lack bf16 -> keep elementwise gate math in f32.
        old_vpu = any(t in kind for t in ("v2", "v3", "v4", "v5 lite", "v5e", "v5lite"))
        if num_cores <= 1 and "v7" in kind:   # 2 TensorCores per chip on v7x
            num_cores = 2
    except Exception:
        pass
    return vmem_bytes, num_cores, old_vpu


def _vsfd_kernel(p_ref, g_ref, w1p_ref, w1g_ref, b1_ref, w2_ref, b2_ref,
                 out_ref, *, gate_dtype):
    """One (row_tile, D) tile of rows -> (row_tile, C_pad) probabilities."""
    p = p_ref[...]                      # (tm, D) compute dtype (bf16)
    g = g_ref[...]

    # combine_fc_layer on cat([p, g]) as two concat-free matmuls, f32 accum.
    z = (jnp.dot(p, w1p_ref[...], preferred_element_type=jnp.float32)
         + jnp.dot(g, w1g_ref[...], preferred_element_type=jnp.float32)
         + b1_ref[...])
    w = jax.nn.sigmoid(z)               # f32 (EUP)

    # Gated fusion: w*p + (1-w)*g == g + w*(p - g).  Blend dtype is bf16 on
    # v6e/v7x (bf16 VPU) and f32 on v5e and older.
    wb = w.astype(gate_dtype)
    pb = p.astype(gate_dtype)
    gb = g.astype(gate_dtype)
    f = gb + wb * (pb - gb)

    # final_fc_layer + softmax over the (lane-padded) class dimension.
    logits = (jnp.dot(f.astype(w2_ref.dtype), w2_ref[...],
                      preferred_element_type=jnp.float32)
              + b2_ref[...])
    m = jnp.max(logits, axis=-1, keepdims=True)
    e = jnp.exp(logits - m)
    denom = jnp.sum(e, axis=-1, keepdims=True)
    # Approx reciprocal runs on the EUP slot (free vs. a VALU divide).  Rows
    # sum to 1 only to ~1e-3/1e-4 relative error — fine for inference/argmax.
    out_ref[...] = (e * pl.reciprocal(denom, approx=True)).astype(out_ref.dtype)


def prepare_vsfd_params(w1, b1, w2, b2, *, compute_dtype=jnp.bfloat16):
    """One-time weight preprocessing (split / cast / lane-pad).

    Call at model init and reuse for every forward: the pad+cast over the full
    f32 W2 rivals the kernel's own HBM traffic, so it must not be paid per step.
    """
    two_d, d = w1.shape
    assert two_d == 2 * d, "combine_fc_layer weight must be (2*D, D)"
    assert w2.shape[0] == d
    c = w2.shape[1]
    c_pad = _round_up(c, 128)           # lane-dense output stores

    w1p = w1[:d, :].astype(compute_dtype)   # applied to the pvam half of concat
    w1g = w1[d:, :].astype(compute_dtype)   # applied to the gsrm half of concat
    b1r = b1.reshape(1, d).astype(jnp.float32)

    w2p = w2.astype(compute_dtype)
    b2r = b2.reshape(1, c).astype(jnp.float32)
    if c_pad != c:
        # Zero W2 pad columns + large-negative f32 pad bias => padded classes
        # carry ~0 probability.  (b2/logits must stay f32: -1e30 in bf16
        # would overflow to -inf and NaN the max-subtract.)
        w2p = jnp.pad(w2p, ((0, 0), (0, c_pad - c)))
        b2r = jnp.pad(b2r, ((0, 0), (0, c_pad - c)), constant_values=-1e30)

    return {"w1p": w1p, "w1g": w1g, "b1": b1r, "w2": w2p, "b2": b2r,
            "dim_hidden": d, "num_classes": c}


def _const_spec(shape):
    """Grid-constant operand: single-buffered (its block index never changes)."""
    index_map = lambda i: (0,) * len(shape)
    try:
        return pl.BlockSpec(shape, index_map, pipeline_mode=pl.Buffered(1))
    except (TypeError, AttributeError):   # older Pallas: fall back to default
        return pl.BlockSpec(shape, index_map)


def vsfd_forward_prepared(pvam, gsrm, params, *, row_tile=None,
                          out_dtype=jnp.bfloat16, trim_padding=True):
    """VSFD forward with pre-prepared params (see prepare_vsfd_params).

    pvam, gsrm: (B, T, D).  Returns (B, T, num_classes) probabilities in
    out_dtype when trim_padding=True; with trim_padding=False returns the raw
    row/lane-padded (M_pad, C_pad) kernel output for fused consumers (padded
    rows/classes carry no probability mass), avoiding a second HBM copy.
    """
    B, T, D = pvam.shape
    assert gsrm.shape == (B, T, D)
    assert params["dim_hidden"] == D

    compute_dtype = params["w1p"].dtype
    C = params["num_classes"]
    C_pad = params["w2"].shape[1]
    M = B * T

    vmem_cap, num_cores, old_vpu = _tpu_generation_info()
    gate_dtype = jnp.float32 if old_vpu else compute_dtype

    itm = jnp.dtype(compute_dtype).itemsize
    oitm = jnp.dtype(out_dtype).itemsize

    # Generation-aware default row tile: 128 on small-VMEM chips (v7x has
    # 64 MiB per TensorCore), 512 on 128 MiB chips (v5e / v6e).  Clamp for
    # tiny problems and round to 16 (bf16 sublane packing).
    if row_tile is None:
        row_tile = 128 if vmem_cap <= 64 * 1024 * 1024 else 512
    row_tile = _round_up(max(16, min(int(row_tile), _round_up(M, 16))), 16)

    # Scoped-VMEM budget: ~3/4 of physical, leaving headroom for Mosaic scratch.
    vmem_budget = min((vmem_cap * 3) // 4, 96 * 1024 * 1024)

    def vmem_estimate(rt):
        return (2 * (2 * rt * D * itm)          # p, g row tiles (double-buffered)
                + 2 * D * D * itm               # W1 halves      (single-buffered)
                + D * C_pad * itm               # W2             (single-buffered)
                + (D + C_pad) * 4               # f32 biases     (single-buffered)
                + 2 * rt * C_pad * oitm         # output tile    (double-buffered)
                + 2 * rt * C_pad * 4            # logits + exp f32 intermediates
                + 3 * rt * D * 4                # sigmoid / blend intermediates
                + 2 * 1024 * 1024)              # Mosaic internal scratch slack

    # Shrink the row tile until the (accurate) estimate fits the budget.
    while row_tile > 16 and vmem_estimate(row_tile) > vmem_budget:
        row_tile = max(16, _round_up(row_tile // 2, 16))

    n_row_blocks = pl.cdiv(M, row_tile)
    # On multi-TensorCore chips (v7x) keep the parallel grid axis divisible by
    # the core count so neither core idles on a ragged tail.
    if num_cores > 1 and n_row_blocks > 1 and n_row_blocks % num_cores:
        n_row_blocks = _round_up(n_row_blocks, num_cores)
    M_pad = n_row_blocks * row_tile

    vmem_limit = int(min(max(vmem_estimate(row_tile), 16 * 1024 * 1024),
                         vmem_budget))

    p2 = pvam.reshape(M, D).astype(compute_dtype)
    g2 = gsrm.reshape(M, D).astype(compute_dtype)
    if M_pad != M:
        p2 = jnp.pad(p2, ((0, M_pad - M), (0, 0)))
        g2 = jnp.pad(g2, ((0, M_pad - M), (0, 0)))

    out = pl.pallas_call(
        functools.partial(_vsfd_kernel, gate_dtype=gate_dtype),
        out_shape=jax.ShapeDtypeStruct((M_pad, C_pad), out_dtype),
        grid_spec=pltpu.PrefetchScalarGridSpec(
            num_scalar_prefetch=0,
            grid=(n_row_blocks,),
            in_specs=[
                pl.BlockSpec((row_tile, D), lambda i: (i, 0)),   # pvam rows
                pl.BlockSpec((row_tile, D), lambda i: (i, 0)),   # gsrm rows
                _const_spec((D, D)),                              # W1 (pvam half)
                _const_spec((D, D)),                              # W1 (gsrm half)
                _const_spec((1, D)),                              # b1
                _const_spec((D, C_pad)),                          # W2 (padded)
                _const_spec((1, C_pad)),                          # b2 (padded)
            ],
            out_specs=pl.BlockSpec((row_tile, C_pad), lambda i: (i, 0)),
        ),
        compiler_params=pltpu.CompilerParams(
            dimension_semantics=("parallel",),
            vmem_limit_bytes=vmem_limit,
        ),
    )(p2, g2, params["w1p"], params["w1g"], params["b1"],
      params["w2"], params["b2"])

    if not trim_padding:
        return out
    if M_pad != M or C_pad != C:
        out = out[:M, :C]
    return out.reshape(B, T, C)


def vsfd_forward(pvam, gsrm, w1, b1, w2, b2, *, row_tile=None,
                 compute_dtype=jnp.bfloat16, out_dtype=jnp.bfloat16,
                 trim_padding=True):
    """Convenience wrapper: prepare weights, then run.  For production, call
    prepare_vsfd_params once at init and vsfd_forward_prepared per step."""
    params = prepare_vsfd_params(w1, b1, w2, b2, compute_dtype=compute_dtype)
    return vsfd_forward_prepared(pvam, gsrm, params, row_tile=row_tile,
                                 out_dtype=out_dtype, trim_padding=trim_padding)


def vsfd_reference(pvam, gsrm, w1, b1, w2, b2):
    combine = jnp.concatenate([pvam, gsrm], axis=-1)
    w = jax.nn.sigmoid(combine @ w1 + b1)
    f = w * pvam + (1.0 - w) * gsrm
    return jax.nn.softmax(f @ w2 + b2, axis=-1)


if __name__ == "__main__":
    # Small shapes consistent with VSFD's forward: (batch, seq, hidden).
    # Real SRN sizes are D=512, C~5560; C is shrunk here for a quick test.
    B, T, D, C = 2, 8, 32, 512

    key = jax.random.PRNGKey(0)
    k_p, k_g, k_w1, k_b1, k_w2, k_b2 = jax.random.split(key, 6)

    pvam = jax.random.normal(k_p, (B, T, D), dtype=jnp.float32)
    gsrm = jax.random.normal(k_g, (B, T, D), dtype=jnp.float32)

    # Linear(2D -> D), Linear(D -> C), stored in (in, out) convention.
    w1 = jax.random.normal(k_w1, (2 * D, D), dtype=jnp.float32) * 0.05
    b1 = jax.random.normal(k_b1, (D,), dtype=jnp.float32) * 0.05
    w2 = jax.random.normal(k_w2, (D, C), dtype=jnp.float32) * 0.05
    b2 = jax.random.normal(k_b2, (C,), dtype=jnp.float32) * 0.05

    # Weight prep is hoisted: done once, reused by every forward call.
    params = prepare_vsfd_params(w1, b1, w2, b2)

    out = vsfd_forward_prepared(pvam, gsrm, params)
    out = jax.block_until_ready(out)

    ref = vsfd_reference(pvam, gsrm, w1, b1, w2, b2)
    assert out.shape == (B, T, C)
    # bf16 MXU operands + bf16 output + approx reciprocal -> loose but real tol.
    err = jnp.max(jnp.abs(out.astype(jnp.float32) - ref))
    assert err < 2e-2, f"mismatch vs reference: {err}"
    row_sums = jnp.sum(out.astype(jnp.float32), axis=-1)
    assert jnp.allclose(row_sums, 1.0, atol=2e-2), "softmax rows must ~sum to 1"

    print("KERNEL_OK")
</pallas_src>

<mosaic_0001>
module attributes {stable_mosaic.version = 11 : i64} {
  func.func @_vsfd_kernel(%arg0: i32, %arg1: memref<16x32xbf16, #tpu.memory_space<vmem>>, %arg2: memref<16x32xbf16, #tpu.memory_space<vmem>>, %arg3: memref<32x32xbf16, #tpu.memory_space<vmem>>, %arg4: memref<32x32xbf16, #tpu.memory_space<vmem>>, %arg5: memref<1x32xf32, #tpu.memory_space<vmem>>, %arg6: memref<32x512xbf16, #tpu.memory_space<vmem>>, %arg7: memref<1x512xf32, #tpu.memory_space<vmem>>, %arg8: memref<16x512xbf16, #tpu.memory_space<vmem>>) attributes {dimension_semantics = [#tpu.dimension_semantics<parallel>], iteration_bounds = array<i64: 1>, scalar_prefetch = 0 : i64, scratch_operands = 0 : i64, tpu.core_type = #tpu.core_type<tc>, window_params = [{transform_indices = @transform_0, window_bounds = array<i64: 16, 32>}, {transform_indices = @transform_1, window_bounds = array<i64: 16, 32>}, {pipeline_mode = #tpu.pipeline_mode<synchronous>, transform_indices = @transform_2, window_bounds = array<i64: 32, 32>}, {pipeline_mode = #tpu.pipeline_mode<synchronous>, transform_indices = @transform_3, window_bounds = array<i64: 32, 32>}, {pipeline_mode = #tpu.pipeline_mode<synchronous>, transform_indices = @transform_4, window_bounds = array<i64: 1, 32>}, {pipeline_mode = #tpu.pipeline_mode<synchronous>, transform_indices = @transform_5, window_bounds = array<i64: 32, 512>}, {pipeline_mode = #tpu.pipeline_mode<synchronous>, transform_indices = @transform_6, window_bounds = array<i64: 1, 512>}, {transform_indices = @transform_7, window_bounds = array<i64: 16, 512>}]} {
    %c0 = arith.constant 0 : index
    %c0_0 = arith.constant 0 : index
    %0 = vector.load %arg1[%c0, %c0_0] : memref<16x32xbf16, #tpu.memory_space<vmem>>, vector<16x32xbf16>
    %c0_1 = arith.constant 0 : index
    %c0_2 = arith.constant 0 : index
    %1 = vector.load %arg2[%c0_1, %c0_2] : memref<16x32xbf16, #tpu.memory_space<vmem>>, vector<16x32xbf16>
    %c0_3 = arith.constant 0 : index
    %c0_4 = arith.constant 0 : index
    %2 = vector.load %arg3[%c0_3, %c0_4] : memref<32x32xbf16, #tpu.memory_space<vmem>>, vector<32x32xbf16>
    %cst = arith.constant dense<0.000000e+00> : vector<16x32xf32>
    %3 = tpu.matmul %0, %2, %cst {dimension_numbers = #tpu.dot_dimension_numbers<[1], [0], [0], [1], [0, 0, 1, 1], [], []>} : vector<16x32xbf16>, vector<32x32xbf16>, vector<16x32xf32> -> vector<16x32xf32>
    %c0_5 = arith.constant 0 : index
    %c0_6 = arith.constant 0 : index
    %4 = vector.load %arg4[%c0_5, %c0_6] : memref<32x32xbf16, #tpu.memory_space<vmem>>, vector<32x32xbf16>
    %cst_7 = arith.constant dense<0.000000e+00> : vector<16x32xf32>
    %5 = tpu.matmul %1, %4, %cst_7 {dimension_numbers = #tpu.dot_dimension_numbers<[1], [0], [0], [1], [0, 0, 1, 1], [], []>} : vector<16x32xbf16>, vector<32x32xbf16>, vector<16x32xf32> -> vector<16x32xf32>
    %6 = arith.addf %3, %5 : vector<16x32xf32>
    %c0_8 = arith.constant 0 : index
    %c0_9 = arith.constant 0 : index
    %7 = vector.load %arg5[%c0_8, %c0_9] : memref<1x32xf32, #tpu.memory_space<vmem>>, vector<1x32xf32>
    %8 = vector.broadcast %7 : vector<1x32xf32> to vector<16x32xf32>
    %9 = arith.addf %6, %8 : vector<16x32xf32>
    %10 = arith.negf %9 : vector<16x32xf32>
    %11 = math.exp %10 : vector<16x32xf32>
    %cst_10 = arith.constant 1.000000e+00 : f32
    %12 = vector.broadcast %cst_10 : f32 to vector<16x32xf32>
    %13 = arith.addf %12, %11 : vector<16x32xf32>
    %14 = arith.divf %12, %13 : vector<16x32xf32>
    %15 = arith.truncf %14 : vector<16x32xf32> to vector<16x32xbf16>
    %16 = arith.subf %0, %1 : vector<16x32xbf16>
    %17 = arith.mulf %15, %16 : vector<16x32xbf16>
    %18 = arith.addf %1, %17 : vector<16x32xbf16>
    %c0_11 = arith.constant 0 : index
    %c0_12 = arith.constant 0 : index
    %19 = vector.load %arg6[%c0_11, %c0_12] : memref<32x512xbf16, #tpu.memory_space<vmem>>, vector<32x512xbf16>
    %cst_13 = arith.constant dense<0.000000e+00> : vector<16x512xf32>
    %20 = tpu.matmul %18, %19, %cst_13 {dimension_numbers = #tpu.dot_dimension_numbers<[1], [0], [0], [1], [0, 0, 1, 1], [], []>} : vector<16x32xbf16>, vector<32x512xbf16>, vector<16x512xf32> -> vector<16x512xf32>
    %c0_14 = arith.constant 0 : index
    %c0_15 = arith.constant 0 : index
    %21 = vector.load %arg7[%c0_14, %c0_15] : memref<1x512xf32, #tpu.memory_space<vmem>>, vector<1x512xf32>
    %22 = vector.broadcast %21 : vector<1x512xf32> to vector<16x512xf32>
    %23 = arith.addf %20, %22 : vector<16x512xf32>
    %cst_16 = arith.constant dense<0xFF800000> : vector<16xf32>
    %24 = vector.multi_reduction <maximumf>, %23, %cst_16 [1] : vector<16x512xf32> to vector<16xf32>
    %25 = vector.shape_cast %24 : vector<16xf32> to vector<16x1xf32>
    %26 = vector.broadcast %25 : vector<16x1xf32> to vector<16x512xf32>
    %27 = arith.subf %23, %26 : vector<16x512xf32>
    %28 = math.exp %27 : vector<16x512xf32>
    %cst_17 = arith.constant dense<0.000000e+00> : vector<16xf32>
    %29 = vector.multi_reduction <add>, %28, %cst_17 [1] : vector<16x512xf32> to vector<16xf32>
    %30 = vector.shape_cast %29 : vector<16xf32> to vector<16x1xf32>
    %31 = tpu.reciprocal %30 {approx = true} : vector<16x1xf32> -> vector<16x1xf32>
    %32 = vector.broadcast %31 : vector<16x1xf32> to vector<16x512xf32>
    %33 = arith.mulf %28, %32 : vector<16x512xf32>
    %34 = arith.truncf %33 : vector<16x512xf32> to vector<16x512xbf16>
    %c0_18 = arith.constant 0 : index
    %c0_19 = arith.constant 0 : index
    %35 = vector.load %arg8[%c0_18, %c0_19] : memref<16x512xbf16, #tpu.memory_space<vmem>>, vector<16x512xbf16>
    tpu.vector_store %arg8[%c0_18, %c0_19], %34 {strides = array<i32>} : memref<16x512xbf16, #tpu.memory_space<vmem>>, vector<16x512xbf16>,
    return
  }
  func.func @transform_0(%arg0: i32) -> (i32, i32) {
    %c0_i32 = arith.constant 0 : i32
    %c0_i32_0 = arith.constant 0 : i32
    return %arg0, %c0_i32 : i32, i32
  }
  func.func @transform_1(%arg0: i32) -> (i32, i32) {
    %c0_i32 = arith.constant 0 : i32
    %c0_i32_0 = arith.constant 0 : i32
    return %arg0, %c0_i32 : i32, i32
  }
  func.func @transform_2(%arg0: i32) -> (i32, i32) {
    %c0_i32 = arith.constant 0 : i32
    %c0_i32_0 = arith.constant 0 : i32
    %c0_i32_1 = arith.constant 0 : i32
    return %c0_i32, %c0_i32_0 : i32, i32
  }
  func.func @transform_3(%arg0: i32) -> (i32, i32) {
    %c0_i32 = arith.constant 0 : i32
    %c0_i32_0 = arith.constant 0 : i32
    %c0_i32_1 = arith.constant 0 : i32
    return %c0_i32, %c0_i32_0 : i32, i32
  }
  func.func @transform_4(%arg0: i32) -> (i32, i32) {
    %c0_i32 = arith.constant 0 : i32
    %c0_i32_0 = arith.constant 0 : i32
    %c0_i32_1 = arith.constant 0 : i32
    return %c0_i32, %c0_i32_0 : i32, i32
  }
  func.func @transform_5(%arg0: i32) -> (i32, i32) {
    %c0_i32 = arith.constant 0 : i32
    %c0_i32_0 = arith.constant 0 : i32
    %c0_i32_1 = arith.constant 0 : i32
    return %c0_i32, %c0_i32_0 : i32, i32
  }
  func.func @transform_6(%arg0: i32) -> (i32, i32) {
    %c0_i32 = arith.constant 0 : i32
    %c0_i32_0 = arith.constant 0 : i32
    %c0_i32_1 = arith.constant 0 : i32
    return %c0_i32, %c0_i32_0 : i32, i32
  }
  func.func @transform_7(%arg0: i32) -> (i32, i32) {
    %c0_i32 = arith.constant 0 : i32
    %c0_i32_0 = arith.constant 0 : i32
    return %arg0, %c0_i32 : i32, i32
  }
}

</mosaic_0001>

<llo_original>
// kernel: tpu_custom_call.1
$region0: #{tpu_custom_call.1}
  #allocation0 [shape = 'u32[]', space=smem, size = 0x4, offset = 0x4, fixed_abs, tag = 'smem constant byte address 0x4 - core index']
  #allocation1 [shape = 'u32[144,128]{1,0:T(1,128)}', space=vmem, size = 0x12000, scoped, tag = 'internal scratch']
  %s0 = inlined_call_operand.hbm [shape: bf16[16,32], index: 0, kind: input, shape index: {}]
  %s1 = inlined_call_operand.hbm [shape: bf16[16,32], index: 1, kind: input, shape index: {}]
  %s2 = inlined_call_operand.hbm [shape: bf16[32,32], index: 2, kind: input, shape index: {}]
  %s3 = inlined_call_operand.hbm [shape: bf16[32,32], index: 3, kind: input, shape index: {}]
  %s4 = inlined_call_operand.vmem [shape: f32[1,32], index: 4, kind: input, shape index: {}]
  %s5 = inlined_call_operand.hbm [shape: bf16[32,512], index: 5, kind: input, shape index: {}]
  %s6 = inlined_call_operand.vmem [shape: f32[1,512], index: 6, kind: input, shape index: {}]
  %s7 = inlined_call_operand.hbm [shape: bf16[16,512], index: 7, kind: output, shape index: {}]
  %s8 = sld [smem:[#allocation0]]
  $region58: #{tpu_custom_call.1} parent=0
    _
  %s10 = ssub.s32 1, %s8
  %s11 = scalar_select 0, %s10, %s8
  $region1: #{tpu_custom_call.1} parent=0
    #allocation2 [shape = 'u8[4096]{0}', space=vmem, size = 0x1000, scoped, tag = 'input window, operand 0, single buffered']
    #allocation3 [shape = 's32[1]{0}', space=sflag, size = 0x4, scoped, tag = 'scoped memory for tpu_custom_call.1']
    #allocation4 [shape = 's32[1]{0}', space=sflag, size = 0x4, scoped, tag = 'scoped memory for tpu_custom_call.1']
    #allocation5 [shape = 'u8[4096]{0}', space=vmem, size = 0x1000, scoped, tag = 'input window, operand 1, single buffered']
    #allocation6 [shape = 's32[1]{0}', space=sflag, size = 0x4, scoped, tag = 'scoped memory for tpu_custom_call.1']
    #allocation7 [shape = 'u8[8192]{0}', space=vmem, size = 0x2000, scoped, tag = 'input window, operand 2, single buffered']
    #allocation8 [shape = 'u8[8192]{0}', space=vmem, size = 0x2000, scoped, tag = 'input window, operand 3, single buffered']
    #allocation9 [shape = 's32[1]{0}', space=sflag, size = 0x4, scoped, tag = 'scoped memory for tpu_custom_call.1']
    #allocation10 [shape = 'u8[32768]{0}', space=vmem, size = 0x8000, scoped, tag = 'input window, operand 5, single buffered']
    #allocation11 [shape = 'u8[16384]{0}', space=vmem, size = 0x4000, scoped, tag = 'output window, operand 0, single buffered']
    %12 = vsyncpa [#allocation3], 0
    %13 = vsyncpa [#allocation6], 0
    %14 = vsyncpa [#allocation9], 0
    %15 = vsyncpa [#allocation4], 0
    // Predicated region
    $region2: #{tpu_custom_call.1} parent=1 // pred_check
      _
    $region3: #{tpu_custom_call.1} parent=1 // pred_check_branch
      %17 = sbr.rel (0) target = $region5
    $region4: #{tpu_custom_call.1} parent=1 // pred_region
      %s19 = ssub.s32 128, 128
      %20 = vsyncadd [#allocation3], %s19
      %s21 = sshll.u32 [#allocation2], 4
      %s22 = int_to_ptr.vmem [resolvable:$true] %s21
      %27 = dma.hbm_to_vmem [thread:$0]  %s0, 128, %s22, [#allocation3], 64, 64, 4
    $region5: #{tpu_custom_call.1} parent=1 // pred_fallthru
      _
    // Predicated region
    $region6: #{tpu_custom_call.1} parent=1 // pred_check
      _
    $region7: #{tpu_custom_call.1} parent=1 // pred_check_branch
      %29 = sbr.rel (0) target = $region9
    $region8: #{tpu_custom_call.1} parent=1 // pred_region
      %s31 = ssub.s32 128, 128
      %32 = vsyncadd [#allocation6], %s31
      %s33 = sshll.u32 [#allocation5], 4
      %s34 = int_to_ptr.vmem [resolvable:$true] %s33
      %39 = dma.hbm_to_vmem [thread:$0]  %s1, 128, %s34, [#allocation6], 64, 64, 4
    $region9: #{tpu_custom_call.1} parent=1 // pred_fallthru
      _
    // Predicated region
    $region10: #{tpu_custom_call.1} parent=1 // pred_check
      _
    $region11: #{tpu_custom_call.1} parent=1 // pred_check_branch
      %41 = sbr.rel (0) target = $region13
    $region12: #{tpu_custom_call.1} parent=1 // pred_region
      %s43 = ssub.s32 256, 256
      %44 = vsyncadd [#allocation6], %s43
      %s45 = sshll.u32 [#allocation7], 4
      %s46 = int_to_ptr.vmem [resolvable:$true] %s45
      %51 = dma.hbm_to_vmem [thread:$0]  %s2, 256, %s46, [#allocation6], 64, 64, 4
    $region13: #{tpu_custom_call.1} parent=1 // pred_fallthru
      _
    // Predicated region
    $region14: #{tpu_custom_call.1} parent=1 // pred_check
      _
    $region15: #{tpu_custom_call.1} parent=1 // pred_check_branch
      %53 = sbr.rel (0) target = $region17
    $region16: #{tpu_custom_call.1} parent=1 // pred_region
      %s55 = ssub.s32 256, 256
      %56 = vsyncadd [#allocation9], %s55
      %s57 = sshll.u32 [#allocation8], 4
      %s58 = int_to_ptr.vmem [resolvable:$true] %s57
      %63 = dma.hbm_to_vmem [thread:$0]  %s3, 256, %s58, [#allocation9], 64, 64, 4
    $region17: #{tpu_custom_call.1} parent=1 // pred_fallthru
      _
    // Predicated region
    $region18: #{tpu_custom_call.1} parent=1 // pred_check
      _
    $region19: #{tpu_custom_call.1} parent=1 // pred_check_branch
      %65 = sbr.rel (0) target = $region21
    $region20: #{tpu_custom_call.1} parent=1 // pred_region
      _
    $region21: #{tpu_custom_call.1} parent=1 // pred_fallthru
      _
    // Predicated region
    $region22: #{tpu_custom_call.1} parent=1 // pred_check
      _
    $region23: #{tpu_custom_call.1} parent=1 // pred_check_branch
      %67 = sbr.rel (0) target = $region25
    $region24: #{tpu_custom_call.1} parent=1 // pred_region
      %s69 = ssub.s32 1024, 1024
      %70 = vsyncadd [#allocation9], %s69
      %s71 = sshll.u32 [#allocation10], 4
      %s72 = int_to_ptr.vmem [resolvable:$true] %s71
      %77 = dma.hbm_to_vmem [thread:$0]  %s5, 1024, %s72, [#allocation9], 256, 256, 16
    $region25: #{tpu_custom_call.1} parent=1 // pred_fallthru
      _
    // Predicated region
    $region26: #{tpu_custom_call.1} parent=1 // pred_check
      _
    $region27: #{tpu_custom_call.1} parent=1 // pred_check_branch
      %79 = sbr.rel (0) target = $region29
    $region28: #{tpu_custom_call.1} parent=1 // pred_region
      _
    $region29: #{tpu_custom_call.1} parent=1 // pred_fallthru
      _
    // Predicated region
    $region30: #{tpu_custom_call.1} parent=1 // pred_check
      _
    $region31: #{tpu_custom_call.1} parent=1 // pred_check_branch
      %81 = sbr.rel (0) target = $region33
    $region32: #{tpu_custom_call.1} parent=1 // pred_region
      %82 = dma.done [#allocation3], 128
    $region33: #{tpu_custom_call.1} parent=1 // pred_fallthru
      _
    // Predicated region
    $region34: #{tpu_custom_call.1} parent=1 // pred_check
      _
    $region35: #{tpu_custom_call.1} parent=1 // pred_check_branch
      %84 = sbr.rel (0) target = $region37
    $region36: #{tpu_custom_call.1} parent=1 // pred_region
      %85 = dma.done [#allocation6], 128
    $region37: #{tpu_custom_call.1} parent=1 // pred_fallthru
      _
    // Predicated region
    $region38: #{tpu_custom_call.1} parent=1 // pred_check
      _
    $region39: #{tpu_custom_call.1} parent=1 // pred_check_branch
      %87 = sbr.rel (0) target = $region41
    $region40: #{tpu_custom_call.1} parent=1 // pred_region
      %88 = dma.done [#allocation6], 256
    $region41: #{tpu_custom_call.1} parent=1 // pred_fallthru
      _
    // Predicated region
    $region42: #{tpu_custom_call.1} parent=1 // pred_check
      _
    $region43: #{tpu_custom_call.1} parent=1 // pred_check_branch
      %90 = sbr.rel (0) target = $region45
    $region44: #{tpu_custom_call.1} parent=1 // pred_region
      %91 = dma.done [#allocation9], 256
    $region45: #{tpu_custom_call.1} parent=1 // pred_fallthru
      _
    // Predicated region
    $region46: #{tpu_custom_call.1} parent=1 // pred_check
      _
    $region47: #{tpu_custom_call.1} parent=1 // pred_check_branch
      %93 = sbr.rel (0) target = $region49
    $region48: #{tpu_custom_call.1} parent=1 // pred_region
      %94 = dma.done [#allocation9], 1024
    $region49: #{tpu_custom_call.1} parent=1 // pred_fallthru
      _
    %v96 = vld [vmem:[#allocation2] sm:$0xf]
    %v97 = vld [vmem:[#allocation2 + $0x4] sm:$0xf]
    %v98 = vld [vmem:[#allocation5] sm:$0xf]
    %v99 = vld [vmem:[#allocation5 + $0x4] sm:$0xf]
    %v100 = vld [vmem:[#allocation7] sm:$0xf]
    %v101 = vld [vmem:[#allocation7 + $0x4] sm:$0xf]
    %v102 = vld [vmem:[#allocation7 + $0x8] sm:$0xf]
    %v103 = vld [vmem:[#allocation7 + $0xc] sm:$0xf]
    %v104 = vld [vmem:[#allocation8] sm:$0xf]
    %v105 = vld [vmem:[#allocation8 + $0x4] sm:$0xf]
    %v106 = vld [vmem:[#allocation8 + $0x8] sm:$0xf]
    %v107 = vld [vmem:[#allocation8 + $0xc] sm:$0xf]
    %v110 = vunpack.c.l.b16 %v98
    %v111 = vunpack.c.l.b16 %v99
    %v112 = vpack.c.b16 %v111, %v110
    %v117 = vunpack.c.l.b16 %v104
    %v118 = vunpack.c.l.b16 %v105
    %v119 = vunpack.c.l.b16 %v106
    %v120 = vunpack.c.l.b16 %v107
    %v121 = vpack.c.b16 %v118, %v117
    %v122 = vpack.c.b16 %v120, %v119
    %vm125 = vcmask 261120
    %v127 = vsel %vm125, %v112, 0
    %129 = vmatprep.subr.bf16.mxu0 0
    %130 = vmatpush1.bf16.msra.mxu0 %v121
    %131 = vmatprep.subr.bf16.mxu0 0
    %132 = vmatpush1.bf16.msra.mxu0 %v122
    %133 = vmatprep.subr.bf16.mxu0 0
    %134 = vmatpush1.bf16.msra.mxu0 0
    %135 = vmatprep.subr.bf16.mxu0 0
    %136 = vmatpush1.bf16.msra.mxu0 0
    %137 = vmatprep.subr.bf16.mxu0 0
    %138 = vmatpush1.bf16.msra.mxu0 0
    %139 = vmatprep.subr.bf16.mxu0 0
    %140 = vmatpush1.bf16.msra.mxu0 0
    %141 = vmatprep.subr.bf16.mxu0 0
    %142 = vmatpush1.bf16.msra.mxu0 0
    %143 = vmatprep.subr.bf16.mxu0 0
    %144 = vmatpush1.bf16.msra.mxu0 0
    %145 = vmatprep.subr.bf16.mxu0 0
    %146 = vmatpush1.bf16.msra.mxu0 0
    %147 = vmatprep.subr.bf16.mxu0 0
    %148 = vmatpush1.bf16.msra.mxu0 0
    %149 = vmatprep.subr.bf16.mxu0 0
    %150 = vmatpush1.bf16.msra.mxu0 0
    %151 = vmatprep.subr.bf16.mxu0 0
    %152 = vmatpush1.bf16.msra.mxu0 0
    %153 = vmatprep.subr.bf16.mxu0 0
    %154 = vmatpush1.bf16.msra.mxu0 0
    %155 = vmatprep.subr.bf16.mxu0 0
    %156 = vmatpush1.bf16.msra.mxu0 0
    %157 = vmatprep.subr.bf16.mxu0 0
    %158 = vmatpush1.bf16.msra.mxu0 0
    %159 = vmatprep.subr.bf16.mxu0 0
    %160 = vmatpush1.bf16.msra.mxu0 0
    %161 = vmatprep.mubr.bf16.mxu0 0
    %162 = vmatmul.mubr.bf16.gmra.mrb[0].mxu0 %v127
    %v163 = vpop.f32.mrb[0].mxu0
    %v164 = vadd.f32 0.0, %v163
    %v165 = vpop.f32.mrb[0].mxu0
    %v166 = vpop.f32.mrb[0].mxu0
    %v167 = vadd.f32 0.0, %v166
    %v168 = vpop.f32.mrb[0].mxu0
    %169 = vdwg.mxu0
    %v172 = vunpack.c.l.b16 %v96
    %v173 = vunpack.c.l.b16 %v97
    %v174 = vpack.c.b16 %v173, %v172
    %v179 = vunpack.c.l.b16 %v100
    %v180 = vunpack.c.l.b16 %v101
    %v181 = vunpack.c.l.b16 %v102
    %v182 = vunpack.c.l.b16 %v103
    %v183 = vpack.c.b16 %v180, %v179
    %v184 = vpack.c.b16 %v182, %v181
    %v188 = vsel %vm125, %v174, 0
    %190 = vmatprep.subr.bf16.mxu0 0
    %191 = vmatpush1.bf16.msra.mxu0 %v183
    %192 = vmatprep.subr.bf16.mxu0 0
    %193 = vmatpush1.bf16.msra.mxu0 %v184
    %194 = vmatprep.subr.bf16.mxu0 0
    %195 = vmatpush1.bf16.msra.mxu0 0
    %196 = vmatprep.subr.bf16.mxu0 0
    %197 = vmatpush1.bf16.msra.mxu0 0
    %198 = vmatprep.subr.bf16.mxu0 0
    %199 = vmatpush1.bf16.msra.mxu0 0
    %200 = vmatprep.subr.bf16.mxu0 0
    %201 = vmatpush1.bf16.msra.mxu0 0
    %202 = vmatprep.subr.bf16.mxu0 0
    %203 = vmatpush1.bf16.msra.mxu0 0
    %204 = vmatprep.subr.bf16.mxu0 0
    %205 = vmatpush1.bf16.msra.mxu0 0
    %206 = vmatprep.subr.bf16.mxu0 0
    %207 = vmatpush1.bf16.msra.mxu0 0
    %208 = vmatprep.subr.bf16.mxu0 0
    %209 = vmatpush1.bf16.msra.mxu0 0
    %210 = vmatprep.subr.bf16.mxu0 0
    %211 = vmatpush1.bf16.msra.mxu0 0
    %212 = vmatprep.subr.bf16.mxu0 0
    %213 = vmatpush1.bf16.msra.mxu0 0
    %214 = vmatprep.subr.bf16.mxu0 0
    %215 = vmatpush1.bf16.msra.mxu0 0
    %216 = vmatprep.subr.bf16.mxu0 0
    %217 = vmatpush1.bf16.msra.mxu0 0
    %218 = vmatprep.subr.bf16.mxu0 0
    %219 = vmatpush1.bf16.msra.mxu0 0
    %220 = vmatprep.subr.bf16.mxu0 0
    %221 = vmatpush1.bf16.msra.mxu0 0
    %222 = vmatprep.mubr.bf16.mxu0 0
    %223 = vmatmul.mubr.bf16.gmra.mrb[0].mxu0 %v188
    %v224 = vpop.f32.mrb[0].mxu0
    %v225 = vadd.f32 %v164, %v224
    %v226 = vpop.f32.mrb[0].mxu0
    %v227 = vpop.f32.mrb[0].mxu0
    %v228 = vadd.f32 %v167, %v227
    %v229 = vpop.f32.mrb[0].mxu0
    %230 = vdwg.mxu0
    %v231 = vld [vmem:[%s4] sm:$0x1]
    %v233 = vlaneseq
    %v234 = vshrl.u32 %v233, 7
    %v235 = vsub.s32 0, %v234
    %v236 = vrot.slane %v231, %v235
    %v238 = vadd.f32 %v225, %v236
    %v239 = vadd.f32 %v228, %v236
    %v240 = vxor.u32 %v238, 2147483648
    %v241 = vxor.u32 %v239, 2147483648
    %v242 = vmul.f32 %v240, 1.442695
    %v243 = vpow.pop %v242
    %v244 = vmul.f32 %v241, 1.442695
    %v245 = vpow.pop %v244
    %v246 = vadd.f32 %v243, 1.0
    %v247 = vadd.f32 %v245, 1.0
    %v248 = vrcp.pop %v246
    %v249 = vmul.f32 1.0, %v248
    %v250 = vrcp.pop %v247
    %v251 = vmul.f32 1.0, %v250
    %v252 = vpack.c.bf16 %v251, %v249
    %v253 = vsub.bf16 %v96, %v98
    %v254 = vsub.bf16 %v97, %v99
    %v257 = vunpack.c.l.b16 %v253
    %v258 = vunpack.c.l.b16 %v254
    %v259 = vpack.c.b16 %v258, %v257
    %v261 = vmul.bf16 %v252, %v259
    %v263 = vunpack.c.l.b16 %v261
    %v264 = vunpack.c.h.b16 %v261
    %v265 = vpack.c.b16 %v263, %v263
    %v266 = vpack.c.b16 %v264, %v264
    %v269 = vadd.bf16 %v98, %v265
    %v270 = vadd.bf16 %v99, %v266
    %v271 = vld [vmem:[#allocation10] sm:$0xff]
    %v272 = vld [vmem:[#allocation10 + $0x8] sm:$0xff]
    %v273 = vld [vmem:[#allocation10 + $0x10] sm:$0xff]
    %v274 = vld [vmem:[#allocation10 + $0x18] sm:$0xff]
    %v275 = vld [vmem:[#allocation10 + $0x20] sm:$0xff]
    %v276 = vld [vmem:[#allocation10 + $0x28] sm:$0xff]
    %v277 = vld [vmem:[#allocation10 + $0x30] sm:$0xff]
    %v278 = vld [vmem:[#allocation10 + $0x38] sm:$0xff]
    %v279 = vld [vmem:[%s6] sm:$0xf]
    %v281 = vlaneseq
    %v282 = vshrl.u32 %v281, 7
    %v283 = vsub.s32 0, %v282
    %v284 = vrot.slane %v279, %v283
    %v285 = vlaneseq
    %v286 = vshrl.u32 %v285, 7
    %v287 = vsub.s32 1, %v286
    %v288 = vrot.slane %v279, %v287
    %v289 = vlaneseq
    %v290 = vshrl.u32 %v289, 7
    %v291 = vsub.s32 2, %v290
    %v292 = vrot.slane %v279, %v291
    %v293 = vlaneseq
    %v294 = vshrl.u32 %v293, 7
    %v295 = vsub.s32 3, %v294
    %v296 = vrot.slane %v279, %v295
    %v303 = vunpack.c.l.b16 %v269
    %v304 = vunpack.c.l.b16 %v270
    %v305 = vpack.c.b16 %v304, %v303
    %v314 = vunpack.c.l.b16 %v271
    %v315 = vunpack.c.h.b16 %v271
    %v316 = vunpack.c.l.b16 %v272
    %v317 = vunpack.c.h.b16 %v272
    %v318 = vunpack.c.l.b16 %v273
    %v319 = vunpack.c.h.b16 %v273
    %v320 = vunpack.c.l.b16 %v274
    %v321 = vunpack.c.h.b16 %v274
    %v322 = vunpack.c.l.b16 %v275
    %v323 = vunpack.c.h.b16 %v275
    %v324 = vunpack.c.l.b16 %v276
    %v325 = vunpack.c.h.b16 %v276
    %v326 = vunpack.c.l.b16 %v277
    %v327 = vunpack.c.h.b16 %v277
    %v328 = vunpack.c.l.b16 %v278
    %v329 = vunpack.c.h.b16 %v278
    %v330 = vpack.c.b16 %v318, %v314
    %v331 = vpack.c.b16 %v319, %v315
    %v332 = vpack.c.b16 %v320, %v316
    %v333 = vpack.c.b16 %v321, %v317
    %v334 = vpack.c.b16 %v326, %v322
    %v335 = vpack.c.b16 %v327, %v323
    %v336 = vpack.c.b16 %v328, %v324
    %v337 = vpack.c.b16 %v329, %v325
    %v347 = vsel %vm125, %v305, 0
    %349 = vmatprep.subr.bf16.mxu0 %v331
    %350 = vmatpush1.bf16.msra.mxu0 %v330
    %351 = vmatprep.subr.bf16.mxu0 %v335
    %352 = vmatpush1.bf16.msra.mxu0 %v334
    %353 = vmatprep.subr.bf16.mxu0 0
    %354 = vmatpush1.bf16.msra.mxu0 0
    %355 = vmatprep.subr.bf16.mxu0 0
    %356 = vmatpush1.bf16.msra.mxu0 0
    %357 = vmatprep.subr.bf16.mxu0 0
    %358 = vmatpush1.bf16.msra.mxu0 0
    %359 = vmatprep.subr.bf16.mxu0 0
    %360 = vmatpush1.bf16.msra.mxu0 0
    %361 = vmatprep.subr.bf16.mxu0 0
    %362 = vmatpush1.bf16.msra.mxu0 0
    %363 = vmatprep.subr.bf16.mxu0 0
    %364 = vmatpush1.bf16.msra.mxu0 0
    %365 = vmatprep.subr.bf16.mxu0 0
    %366 = vmatpush1.bf16.msra.mxu0 0
    %367 = vmatprep.subr.bf16.mxu0 0
    %368 = vmatpush1.bf16.msra.mxu0 0
    %369 = vmatprep.subr.bf16.mxu0 0
    %370 = vmatpush1.bf16.msra.mxu0 0
    %371 = vmatprep.subr.bf16.mxu0 0
    %372 = vmatpush1.bf16.msra.mxu0 0
    %373 = vmatprep.subr.bf16.mxu0 0
    %374 = vmatpush1.bf16.msra.mxu0 0
    %375 = vmatprep.subr.bf16.mxu0 0
    %376 = vmatpush1.bf16.msra.mxu0 0
    %377 = vmatprep.subr.bf16.mxu0 0
    %378 = vmatpush1.bf16.msra.mxu0 0
    %379 = vmatprep.subr.bf16.mxu0 0
    %380 = vmatpush1.bf16.msra.mxu0 0
    %381 = vmatprep.mubr.bf16.mxu0 0
    %382 = vmatmul.mubr.bf16.gmra.mrb[0].mxu0 %v347
    %v383 = vpop.f32.mrb[0].mxu0
    %v384 = vadd.f32 %v284, %v383
    %v385 = vpop.f32.mrb[0].mxu0
    %v386 = vadd.f32 %v288, %v385
    %v387 = vpop.f32.mrb[0].mxu0
    %v388 = vadd.f32 %v284, %v387
    %v389 = vpop.f32.mrb[0].mxu0
    %v390 = vadd.f32 %v288, %v389
    %391 = vdwg.mxu0
    %392 = vmatprep.subr.bf16.mxu0 %v333
    %393 = vmatpush1.bf16.msra.mxu0 %v332
    %394 = vmatprep.subr.bf16.mxu0 %v337
    %395 = vmatpush1.bf16.msra.mxu0 %v336
    %396 = vmatprep.subr.bf16.mxu0 0
    %397 = vmatpush1.bf16.msra.mxu0 0
    %398 = vmatprep.subr.bf16.mxu0 0
    %399 = vmatpush1.bf16.msra.mxu0 0
    %400 = vmatprep.subr.bf16.mxu0 0
    %401 = vmatpush1.bf16.msra.mxu0 0
    %402 = vmatprep.subr.bf16.mxu0 0
    %403 = vmatpush1.bf16.msra.mxu0 0
    %404 = vmatprep.subr.bf16.mxu0 0
    %405 = vmatpush1.bf16.msra.mxu0 0
    %406 = vmatprep.subr.bf16.mxu0 0
    %407 = vmatpush1.bf16.msra.mxu0 0
    %408 = vmatprep.subr.bf16.mxu0 0
    %409 = vmatpush1.bf16.msra.mxu0 0
    %410 = vmatprep.subr.bf16.mxu0 0
    %411 = vmatpush1.bf16.msra.mxu0 0
    %412 = vmatprep.subr.bf16.mxu0 0
    %413 = vmatpush1.bf16.msra.mxu0 0
    %414 = vmatprep.subr.bf16.mxu0 0
    %415 = vmatpush1.bf16.msra.mxu0 0
    %416 = vmatprep.subr.bf16.mxu0 0
    %417 = vmatpush1.bf16.msra.mxu0 0
    %418 = vmatprep.subr.bf16.mxu0 0
    %419 = vmatpush1.bf16.msra.mxu0 0
    %420 = vmatprep.subr.bf16.mxu0 0
    %421 = vmatpush1.bf16.msra.mxu0 0
    %422 = vmatprep.subr.bf16.mxu0 0
    %423 = vmatpush1.bf16.msra.mxu0 0
    %424 = vmatprep.mubr.bf16.mxu0 0
    %425 = vmatmul.mubr.bf16.gmra.mrb[0].mxu0 %v347
    %v426 = vpop.f32.mrb[0].mxu0
    %v427 = vadd.f32 %v292, %v426
    %v428 = vpop.f32.mrb[0].mxu0
    %v429 = vadd.f32 %v296, %v428
    %v430 = vpop.f32.mrb[0].mxu0
    %v431 = vadd.f32 %v292, %v430
    %v432 = vpop.f32.mrb[0].mxu0
    %v433 = vadd.f32 %v296, %v432
    %434 = vdwg.mxu0
    %v435 = vmax.f32 %v384, %v427
    %v436 = vmax.f32 %v386, %v429
    %v437 = vmax.f32 %v435, %v436
    %438 = vmax.xlane.f32.xlu0 %v437
    %v439 = vpop.xlane.xlu0 %438
    %v440 = vmax.f32 %v388, %v431
    %v441 = vmax.f32 %v390, %v433
    %v442 = vmax.f32 %v440, %v441
    %443 = vmax.xlane.f32.xlu0 %v442
    %v444 = vpop.xlane.xlu0 %443
    %v445 = vsub.f32 %v384, %v439
    %v446 = vsub.f32 %v386, %v439
    %v447 = vsub.f32 %v427, %v439
    %v448 = vsub.f32 %v429, %v439
    %v449 = vsub.f32 %v388, %v444
    %v450 = vsub.f32 %v390, %v444
    %v451 = vsub.f32 %v431, %v444
    %v452 = vsub.f32 %v433, %v444
    %v453 = vmul.f32 %v445, 1.442695
    %v454 = vpow.pop %v453
    %v455 = vmul.f32 %v446, 1.442695
    %v456 = vpow.pop %v455
    %v457 = vmul.f32 %v447, 1.442695
    %v458 = vpow.pop %v457
    %v459 = vmul.f32 %v448, 1.442695
    %v460 = vpow.pop %v459
    %v461 = vmul.f32 %v449, 1.442695
    %v462 = vpow.pop %v461
    %v463 = vmul.f32 %v450, 1.442695
    %v464 = vpow.pop %v463
    %v465 = vmul.f32 %v451, 1.442695
    %v466 = vpow.pop %v465
    %v467 = vmul.f32 %v452, 1.442695
    %v468 = vpow.pop %v467
    %v469 = vadd.f32 %v454, %v456
    %v470 = vadd.f32 %v469, %v458
    %v471 = vadd.f32 %v470, %v460
    %472 = vadd.xlane.f32.xlu0 %v471
    %v473 = vpop.xlane.xlu0 %472
    %v474 = vadd.f32 %v462, %v464
    %v475 = vadd.f32 %v474, %v466
    %v476 = vadd.f32 %v475, %v468
    %477 = vadd.xlane.f32.xlu0 %v476
    %v478 = vpop.xlane.xlu0 %477
    %v479 = vrcp.pop %v473
    %v480 = vrcp.pop %v478
    %v481 = vmul.f32 %v454, %v479
    %v482 = vmul.f32 %v456, %v479
    %v483 = vmul.f32 %v458, %v479
    %v484 = vmul.f32 %v460, %v479
    %v485 = vmul.f32 %v462, %v480
    %v486 = vmul.f32 %v464, %v480
    %v487 = vmul.f32 %v466, %v480
    %v488 = vmul.f32 %v468, %v480
    %v489 = vpack.c.bf16 %v485, %v481
    %v490 = vpack.c.bf16 %v486, %v482
    %v491 = vpack.c.bf16 %v487, %v483
    %v492 = vpack.c.bf16 %v488, %v484
    %v497 = vunpack.c.l.b16 %v489
    %v498 = vunpack.c.l.b16 %v490
    %v499 = vunpack.c.l.b16 %v491
    %v500 = vunpack.c.l.b16 %v492
    %v501 = vunpack.c.h.b16 %v489
    %v502 = vunpack.c.h.b16 %v490
    %v503 = vunpack.c.h.b16 %v491
    %v504 = vunpack.c.h.b16 %v492
    %v505 = vpack.c.b16 %v498, %v497
    %v506 = vpack.c.b16 %v500, %v499
    %v507 = vpack.c.b16 %v502, %v501
    %v508 = vpack.c.b16 %v504, %v503
    %513 = vst [vmem:[#allocation11] sm:$0xff] %v505
    %514 = vst [vmem:[#allocation11 + $0x8] sm:$0xff] %v506
    %515 = vst [vmem:[#allocation11 + $0x10] sm:$0xff] %v507
    %516 = vst [vmem:[#allocation11 + $0x18] sm:$0xff] %v508
    // Predicated region
    $region50: #{tpu_custom_call.1} parent=1 // pred_check
      _
    $region51: #{tpu_custom_call.1} parent=1 // pred_check_branch
      %518 = sbr.rel (0) target = $region53
    $region52: #{tpu_custom_call.1} parent=1 // pred_region
      %s520 = ssub.s32 512, 512
      %521 = vsyncadd [#allocation4], %s520
      %s522 = sshll.u32 [#allocation11], 4
      %s523 = int_to_ptr.vmem [resolvable:$true] %s522
      %528 = dma.vmem_to_hbm [thread:$0]  %s523, 512, %s7, [#allocation4], 256, 256, 16
    $region53: #{tpu_custom_call.1} parent=1 // pred_fallthru
      _
    // Predicated region
    $region54: #{tpu_custom_call.1} parent=1 // pred_check
      _
    $region55: #{tpu_custom_call.1} parent=1 // pred_check_branch
      %530 = sbr.rel (0) target = $region57
    $region56: #{tpu_custom_call.1} parent=1 // pred_region
      %531 = dma.done [#allocation4], 512
    $region57: #{tpu_custom_call.1} parent=1 // pred_fallthru
      _
    %532 = vsyncpa [#allocation3], 1
    %533 = vsyncpa [#allocation6], 1
    %534 = vsyncpa [#allocation9], 1
    %535 = vsyncpa [#allocation4], 1

</llo_original>
